<compile_context>
chip_gen: v5e
topology: v5e:2x2
jax: 0.10.0
libtpu: 0.0.40
codegen_flags: <defaults>
</compile_context>

<pallas_src>
import functools

import jax
import jax.numpy as jnp
from jax.experimental import pallas as pl
from jax.experimental.pallas import tpu as pltpu


_VMEM_TILE_BUDGET = 24 * 1024 * 1024   # budget for double-buffered (in + out) tiles
_VMEM_LIMIT = 32 * 1024 * 1024         # scoped VMEM requested from Mosaic


def _lane_pad(n: int) -> int:
    return -(-n // 128) * 128


def _sub_pad(n: int, itemsize: int) -> int:
    m = 8 * max(1, 4 // itemsize)
    return -(-n // m) * m


def _choose_tb(B: int, per_slice_bytes: int, sub_mult: int) -> int:
    """Leading-dim block size: as big as the VMEM budget allows, but with
    >= 4 grid steps when B permits (pipelining + v7x megacore sharding)."""
    tb = max(1, _VMEM_TILE_BUDGET // (2 * per_slice_bytes))
    tb = min(tb, B)
    min_steps = 4
    if B >= min_steps and pl.cdiv(B, tb) < min_steps:
        tb = pl.cdiv(B, min_steps)
    # Sublane alignment when TB is the second-minor dim of the block; if the
    # rounded value reaches B it equals the full array dim, which is also legal.
    tb = min(B, -(-tb // sub_mult) * sub_mult)
    return int(tb)


# ---------------- lane-dense (flattened) path: small / lane-sparse W ----------

def _padder_kernel_flat(x_ref, o_ref, *, H: int, W: int):
    """x_ref: (TB, H*W) input rows; o_ref: (TB, Hp*Wp) float32 output rows.

    Fill the whole lane-dense output tile with 0.5, then place each input row h
    at flat offset (h+2)*Wp + 2 with a static slice store.  The re-striding
    lands on VPU/vst slots, which have slack in this HBM-bound kernel.
    """
    Wp = W + 4
    o_ref[...] = jnp.full(o_ref.shape, 0.5, dtype=o_ref.dtype)
    for h in range(H):
        dst = (h + 2) * Wp + 2
        o_ref[:, dst:dst + W] = x_ref[:, h * W:(h + 1) * W].astype(o_ref.dtype)


def _call_flat(B, H, W, TB, in_dtype):
    L_in = H * W
    L_out = (H + 4) * (W + 4)
    kernel = functools.partial(_padder_kernel_flat, H=H, W=W)
    return pl.pallas_call(
        kernel,
        out_shape=jax.ShapeDtypeStruct((B, L_out), jnp.float32),
        grid_spec=pltpu.PrefetchScalarGridSpec(
            num_scalar_prefetch=0,
            grid=(pl.cdiv(B, TB),),
            in_specs=[pl.BlockSpec((TB, L_in), lambda b: (b, 0))],
            out_specs=pl.BlockSpec((TB, L_out), lambda b: (b, 0)),
        ),
        compiler_params=pltpu.CompilerParams(
            dimension_semantics=("parallel",),
            vmem_limit_bytes=_VMEM_LIMIT),
        cost_estimate=pl.CostEstimate(
            flops=0, transcendentals=0,
            bytes_accessed=int(B * L_in * jnp.dtype(in_dtype).itemsize
                               + B * L_out * 4)),
    )


# ---------------- 3-D path: W already lane-dense (or very tall images) --------

def _padder_kernel_3d(x_ref, o_ref):
    """x_ref: (TB, H, W); o_ref: (TB, Hp, Wp).  Border-only fills plus one
    interior store; no full-tile rewrite and no concatenate temporaries."""
    TB, H, W = x_ref.shape
    dt = o_ref.dtype
    o_ref[:, 0:2, :] = jnp.full((TB, 2, W + 4), 0.5, dt)
    o_ref[:, H + 2:H + 4, :] = jnp.full((TB, 2, W + 4), 0.5, dt)
    o_ref[:, 2:H + 2, 0:2] = jnp.full((TB, H, 2), 0.5, dt)
    o_ref[:, 2:H + 2, W + 2:W + 4] = jnp.full((TB, H, 2), 0.5, dt)
    o_ref[:, 2:H + 2, 2:W + 2] = x_ref[...].astype(dt)


def _call_3d(B, H, W, TB, in_dtype):
    Hp, Wp = H + 4, W + 4
    return pl.pallas_call(
        _padder_kernel_3d,
        out_shape=jax.ShapeDtypeStruct((B, Hp, Wp), jnp.float32),
        grid_spec=pltpu.PrefetchScalarGridSpec(
            num_scalar_prefetch=0,
            grid=(pl.cdiv(B, TB),),
            in_specs=[pl.BlockSpec((TB, H, W), lambda b: (b, 0, 0))],
            out_specs=pl.BlockSpec((TB, Hp, Wp), lambda b: (b, 0, 0)),
        ),
        compiler_params=pltpu.CompilerParams(
            dimension_semantics=("parallel",),
            vmem_limit_bytes=_VMEM_LIMIT),
        cost_estimate=pl.CostEstimate(
            flops=0, transcendentals=0,
            bytes_accessed=int(B * H * W * jnp.dtype(in_dtype).itemsize
                               + B * Hp * Wp * 4)),
    )


def padder(pic_in: jax.Array) -> jax.Array:
    """Pad dims 3 and 4 by 2 on each side with value 0.5 (float32 output)."""
    assert pic_in.ndim == 5, "expected 5-D input [N, T, C, H, W]"
    N, T, C, H, W = pic_in.shape
    B = N * T * C
    Hp, Wp = H + 4, W + 4
    itemsize = jnp.dtype(pic_in.dtype).itemsize

    # Static shape-based selection (no try/except fallback):
    #   * lane-sparse W  -> flattened lane-dense path (biggest measured lever),
    #     as long as the unrolled per-row re-striding (H stores) stays small;
    #   * W a multiple of 128 (already lane-dense) or very tall images -> 3-D path.
    use_flat = (W % 128 != 0) and (H <= 128)

    if use_flat:
        per_slice = _lane_pad(H * W) * itemsize + _lane_pad(Hp * Wp) * 4
        sub_mult = 8 * max(1, 4 // itemsize)         # TB is the sublane dim here
        TB = _choose_tb(B, per_slice, sub_mult)
        out_flat = _call_flat(B, H, W, TB, pic_in.dtype)(pic_in.reshape(B, H * W))
        return out_flat.reshape(N, T, C, Hp, Wp)

    # TODO(synk): for H > 128 with lane-sparse W, a fori_loop-based re-striding
    # would keep the lane-dense layout without unrolling H stores.
    per_slice = (_lane_pad(W) * _sub_pad(H, itemsize) * itemsize
                 + _lane_pad(Wp) * _sub_pad(Hp, 4) * 4)
    TB = _choose_tb(B, per_slice, 1)                 # TB is a leading (free) dim
    out = _call_3d(B, H, W, TB, pic_in.dtype)(pic_in.reshape(B, H, W))
    return out.reshape(N, T, C, Hp, Wp)


if __name__ == "__main__":
    key = jax.random.PRNGKey(0)
    # Small 5-D input consistent with the forward (dims 3 and 4 get padded).
    N, T, C, H, W = 2, 3, 4, 16, 16
    pic_in = jax.random.normal(key, (N, T, C, H, W), dtype=jnp.float32)

    out = padder(pic_in)
    jax.block_until_ready(out)

    # Reference check in plain JAX (matches the PyTorch forward).
    ref = jnp.full((N, T, C, H + 4, W + 4), 0.5, dtype=jnp.float32)
    ref = ref.at[:, :, :, 2:H + 2, 2:W + 2].set(pic_in)
    assert out.shape == (N, T, C, H + 4, W + 4)
    assert out.dtype == jnp.float32
    assert jnp.allclose(out, ref), "mismatch vs reference"

    print("KERNEL_OK")
</pallas_src>

<mosaic_0001>
module attributes {stable_mosaic.version = 11 : i64} {
  func.func @_padder_kernel_flat(%arg0: i32, %arg1: memref<8x256xf32, #tpu.memory_space<vmem>>, %arg2: memref<8x400xf32, #tpu.memory_space<vmem>>) attributes {dimension_semantics = [#tpu.dimension_semantics<parallel>], iteration_bounds = array<i64: 3>, scalar_prefetch = 0 : i64, scratch_operands = 0 : i64, tpu.core_type = #tpu.core_type<tc>, window_params = [{transform_indices = @transform_0, window_bounds = array<i64: 8, 256>}, {transform_indices = @transform_1, window_bounds = array<i64: 8, 400>}]} {
    %cst = arith.constant 5.000000e-01 : f32
    %0 = vector.broadcast %cst : f32 to vector<8x400xf32>
    %c0 = arith.constant 0 : index
    %c0_0 = arith.constant 0 : index
    %1 = vector.load %arg2[%c0, %c0_0] : memref<8x400xf32, #tpu.memory_space<vmem>>, vector<8x400xf32>
    tpu.vector_store %arg2[%c0, %c0_0], %0 {strides = array<i32>} : memref<8x400xf32, #tpu.memory_space<vmem>>, vector<8x400xf32>,
    %c0_1 = arith.constant 0 : index
    %c0_2 = arith.constant 0 : index
    %2 = vector.load %arg1[%c0_1, %c0_2] : memref<8x256xf32, #tpu.memory_space<vmem>>, vector<8x16xf32>
    %c0_3 = arith.constant 0 : index
    %c42 = arith.constant 42 : index
    %3 = vector.load %arg2[%c0_3, %c42] : memref<8x400xf32, #tpu.memory_space<vmem>>, vector<8x16xf32>
    tpu.vector_store %arg2[%c0_3, %c42], %2 {strides = array<i32>} : memref<8x400xf32, #tpu.memory_space<vmem>>, vector<8x16xf32>,
    %c0_4 = arith.constant 0 : index
    %c16 = arith.constant 16 : index
    %4 = vector.load %arg1[%c0_4, %c16] : memref<8x256xf32, #tpu.memory_space<vmem>>, vector<8x16xf32>
    %c0_5 = arith.constant 0 : index
    %c62 = arith.constant 62 : index
    %5 = vector.load %arg2[%c0_5, %c62] : memref<8x400xf32, #tpu.memory_space<vmem>>, vector<8x16xf32>
    tpu.vector_store %arg2[%c0_5, %c62], %4 {strides = array<i32>} : memref<8x400xf32, #tpu.memory_space<vmem>>, vector<8x16xf32>,
    %c0_6 = arith.constant 0 : index
    %c32 = arith.constant 32 : index
    %6 = vector.load %arg1[%c0_6, %c32] : memref<8x256xf32, #tpu.memory_space<vmem>>, vector<8x16xf32>
    %c0_7 = arith.constant 0 : index
    %c82 = arith.constant 82 : index
    %7 = vector.load %arg2[%c0_7, %c82] : memref<8x400xf32, #tpu.memory_space<vmem>>, vector<8x16xf32>
    tpu.vector_store %arg2[%c0_7, %c82], %6 {strides = array<i32>} : memref<8x400xf32, #tpu.memory_space<vmem>>, vector<8x16xf32>,
    %c0_8 = arith.constant 0 : index
    %c48 = arith.constant 48 : index
    %8 = vector.load %arg1[%c0_8, %c48] : memref<8x256xf32, #tpu.memory_space<vmem>>, vector<8x16xf32>
    %c0_9 = arith.constant 0 : index
    %c102 = arith.constant 102 : index
    %9 = vector.load %arg2[%c0_9, %c102] : memref<8x400xf32, #tpu.memory_space<vmem>>, vector<8x16xf32>
    tpu.vector_store %arg2[%c0_9, %c102], %8 {strides = array<i32>} : memref<8x400xf32, #tpu.memory_space<vmem>>, vector<8x16xf32>,
    %c0_10 = arith.constant 0 : index
    %c64 = arith.constant 64 : index
    %10 = vector.load %arg1[%c0_10, %c64] : memref<8x256xf32, #tpu.memory_space<vmem>>, vector<8x16xf32>
    %c0_11 = arith.constant 0 : index
    %c122 = arith.constant 122 : index
    %11 = vector.load %arg2[%c0_11, %c122] : memref<8x400xf32, #tpu.memory_space<vmem>>, vector<8x16xf32>
    tpu.vector_store %arg2[%c0_11, %c122], %10 {strides = array<i32>} : memref<8x400xf32, #tpu.memory_space<vmem>>, vector<8x16xf32>,
    %c0_12 = arith.constant 0 : index
    %c80 = arith.constant 80 : index
    %12 = vector.load %arg1[%c0_12, %c80] : memref<8x256xf32, #tpu.memory_space<vmem>>, vector<8x16xf32>
    %c0_13 = arith.constant 0 : index
    %c142 = arith.constant 142 : index
    %13 = vector.load %arg2[%c0_13, %c142] : memref<8x400xf32, #tpu.memory_space<vmem>>, vector<8x16xf32>
    tpu.vector_store %arg2[%c0_13, %c142], %12 {strides = array<i32>} : memref<8x400xf32, #tpu.memory_space<vmem>>, vector<8x16xf32>,
    %c0_14 = arith.constant 0 : index
    %c96 = arith.constant 96 : index
    %14 = vector.load %arg1[%c0_14, %c96] : memref<8x256xf32, #tpu.memory_space<vmem>>, vector<8x16xf32>
    %c0_15 = arith.constant 0 : index
    %c162 = arith.constant 162 : index
    %15 = vector.load %arg2[%c0_15, %c162] : memref<8x400xf32, #tpu.memory_space<vmem>>, vector<8x16xf32>
    tpu.vector_store %arg2[%c0_15, %c162], %14 {strides = array<i32>} : memref<8x400xf32, #tpu.memory_space<vmem>>, vector<8x16xf32>,
    %c0_16 = arith.constant 0 : index
    %c112 = arith.constant 112 : index
    %16 = vector.load %arg1[%c0_16, %c112] : memref<8x256xf32, #tpu.memory_space<vmem>>, vector<8x16xf32>
    %c0_17 = arith.constant 0 : index
    %c182 = arith.constant 182 : index
    %17 = vector.load %arg2[%c0_17, %c182] : memref<8x400xf32, #tpu.memory_space<vmem>>, vector<8x16xf32>
    tpu.vector_store %arg2[%c0_17, %c182], %16 {strides = array<i32>} : memref<8x400xf32, #tpu.memory_space<vmem>>, vector<8x16xf32>,
    %c0_18 = arith.constant 0 : index
    %c128 = arith.constant 128 : index
    %18 = vector.load %arg1[%c0_18, %c128] : memref<8x256xf32, #tpu.memory_space<vmem>>, vector<8x16xf32>
    %c0_19 = arith.constant 0 : index
    %c202 = arith.constant 202 : index
    %19 = vector.load %arg2[%c0_19, %c202] : memref<8x400xf32, #tpu.memory_space<vmem>>, vector<8x16xf32>
    tpu.vector_store %arg2[%c0_19, %c202], %18 {strides = array<i32>} : memref<8x400xf32, #tpu.memory_space<vmem>>, vector<8x16xf32>,
    %c0_20 = arith.constant 0 : index
    %c144 = arith.constant 144 : index
    %20 = vector.load %arg1[%c0_20, %c144] : memref<8x256xf32, #tpu.memory_space<vmem>>, vector<8x16xf32>
    %c0_21 = arith.constant 0 : index
    %c222 = arith.constant 222 : index
    %21 = vector.load %arg2[%c0_21, %c222] : memref<8x400xf32, #tpu.memory_space<vmem>>, vector<8x16xf32>
    tpu.vector_store %arg2[%c0_21, %c222], %20 {strides = array<i32>} : memref<8x400xf32, #tpu.memory_space<vmem>>, vector<8x16xf32>,
    %c0_22 = arith.constant 0 : index
    %c160 = arith.constant 160 : index
    %22 = vector.load %arg1[%c0_22, %c160] : memref<8x256xf32, #tpu.memory_space<vmem>>, vector<8x16xf32>
    %c0_23 = arith.constant 0 : index
    %c242 = arith.constant 242 : index
    %23 = vector.load %arg2[%c0_23, %c242] : memref<8x400xf32, #tpu.memory_space<vmem>>, vector<8x16xf32>
    tpu.vector_store %arg2[%c0_23, %c242], %22 {strides = array<i32>} : memref<8x400xf32, #tpu.memory_space<vmem>>, vector<8x16xf32>,
    %c0_24 = arith.constant 0 : index
    %c176 = arith.constant 176 : index
    %24 = vector.load %arg1[%c0_24, %c176] : memref<8x256xf32, #tpu.memory_space<vmem>>, vector<8x16xf32>
    %c0_25 = arith.constant 0 : index
    %c262 = arith.constant 262 : index
    %25 = vector.load %arg2[%c0_25, %c262] : memref<8x400xf32, #tpu.memory_space<vmem>>, vector<8x16xf32>
    tpu.vector_store %arg2[%c0_25, %c262], %24 {strides = array<i32>} : memref<8x400xf32, #tpu.memory_space<vmem>>, vector<8x16xf32>,
    %c0_26 = arith.constant 0 : index
    %c192 = arith.constant 192 : index
    %26 = vector.load %arg1[%c0_26, %c192] : memref<8x256xf32, #tpu.memory_space<vmem>>, vector<8x16xf32>
    %c0_27 = arith.constant 0 : index
    %c282 = arith.constant 282 : index
    %27 = vector.load %arg2[%c0_27, %c282] : memref<8x400xf32, #tpu.memory_space<vmem>>, vector<8x16xf32>
    tpu.vector_store %arg2[%c0_27, %c282], %26 {strides = array<i32>} : memref<8x400xf32, #tpu.memory_space<vmem>>, vector<8x16xf32>,
    %c0_28 = arith.constant 0 : index
    %c208 = arith.constant 208 : index
    %28 = vector.load %arg1[%c0_28, %c208] : memref<8x256xf32, #tpu.memory_space<vmem>>, vector<8x16xf32>
    %c0_29 = arith.constant 0 : index
    %c302 = arith.constant 302 : index
    %29 = vector.load %arg2[%c0_29, %c302] : memref<8x400xf32, #tpu.memory_space<vmem>>, vector<8x16xf32>
    tpu.vector_store %arg2[%c0_29, %c302], %28 {strides = array<i32>} : memref<8x400xf32, #tpu.memory_space<vmem>>, vector<8x16xf32>,
    %c0_30 = arith.constant 0 : index
    %c224 = arith.constant 224 : index
    %30 = vector.load %arg1[%c0_30, %c224] : memref<8x256xf32, #tpu.memory_space<vmem>>, vector<8x16xf32>
    %c0_31 = arith.constant 0 : index
    %c322 = arith.constant 322 : index
    %31 = vector.load %arg2[%c0_31, %c322] : memref<8x400xf32, #tpu.memory_space<vmem>>, vector<8x16xf32>
    tpu.vector_store %arg2[%c0_31, %c322], %30 {strides = array<i32>} : memref<8x400xf32, #tpu.memory_space<vmem>>, vector<8x16xf32>,
    %c0_32 = arith.constant 0 : index
    %c240 = arith.constant 240 : index
    %32 = vector.load %arg1[%c0_32, %c240] : memref<8x256xf32, #tpu.memory_space<vmem>>, vector<8x16xf32>
    %c0_33 = arith.constant 0 : index
    %c342 = arith.constant 342 : index
    %33 = vector.load %arg2[%c0_33, %c342] : memref<8x400xf32, #tpu.memory_space<vmem>>, vector<8x16xf32>
    tpu.vector_store %arg2[%c0_33, %c342], %32 {strides = array<i32>} : memref<8x400xf32, #tpu.memory_space<vmem>>, vector<8x16xf32>,
    return
  }
  func.func @transform_0(%arg0: i32) -> (i32, i32) {
    %c0_i32 = arith.constant 0 : i32
    %c0_i32_0 = arith.constant 0 : i32
    return %arg0, %c0_i32 : i32, i32
  }
  func.func @transform_1(%arg0: i32) -> (i32, i32) {
    %c0_i32 = arith.constant 0 : i32
    %c0_i32_0 = arith.constant 0 : i32
    return %arg0, %c0_i32 : i32, i32
  }
}

</mosaic_0001>

<llo_original>
// kernel: tpu_custom_call.1
$region0: #{tpu_custom_call.1}
  #allocation0 [shape = 'u32[]', space=smem, size = 0x4, offset = 0x4, fixed_abs, tag = 'smem constant byte address 0x4 - core index']
  #allocation1 [shape = 'u32[72,128]{1,0:T(1,128)}', space=vmem, size = 0x9000, scoped, tag = 'internal scratch']
  %s0 = inlined_call_operand.hbm [shape: f32[24,256], index: 0, kind: input, shape index: {}]
  %s1 = inlined_call_operand.hbm [shape: f32[24,400], index: 1, kind: output, shape index: {}]
  %s2 = sld [smem:[#allocation0]]
  $region41: #{tpu_custom_call.1} parent=0
    _
  %s4 = ssub.s32 1, %s2
  %s5 = scalar_select 0, %s4, %s2
  $region1: #{tpu_custom_call.1} parent=0
    #allocation2 [shape = 'u8[16384]{0}', space=vmem, size = 0x4000, scoped, tag = 'input window, operand 0']
    #allocation3 [shape = 's32[2]{0}', space=sflag, size = 0x8, scoped, tag = 'scoped memory for tpu_custom_call.1']
    #allocation4 [shape = 's32[2]{0}', space=sflag, size = 0x8, scoped, tag = 'scoped memory for tpu_custom_call.1']
    #allocation5 [shape = 'u8[32768]{0}', space=vmem, size = 0x8000, scoped, tag = 'output window, operand 0']
    %6 = vsyncpa [#allocation3], 0
    %s7 = scalar_lea.sflag [#allocation3], 1
    %8 = vsyncpa %s7, 0
    %9 = vsyncpa [#allocation4], 0
    %s10 = scalar_lea.sflag [#allocation4], 1
    %11 = vsyncpa %s10, 0
    loop: start=0, step=1, limit=5
    $region2: #{tpu_custom_call.1} parent=1 // loop_pre_header
      _
    $region3: #{tpu_custom_call.1} parent=1 // loop_header
      %s13 = sphi 0, %s17
      %p14 = scmp.ge.s32.totalorder %s13, 5
      %s23 = sphi 0, %s25
      %s26 = sphi 0, %s23
      %s27 = sphi 0, %s26
      %s43 = sphi 0, %s27
      %s49 = sphi 0, %s51
      %s52 = sphi 0, %s49
      %s53 = sphi 0, %s52
      %s69 = sphi 0, %s53
    $region4: #{tpu_custom_call.1} parent=1 // loop_header_branch
      %16 = sbr.rel (%p14) target = $region8
    $region5: #{tpu_custom_call.1} parent=1 // loop_body
      %s18 = ssub.s32 %s13, 1
      %s19 = ssub.s32 %s13, 2
      %s20 = sadd.s32 %s13, 1
      %s21 = ssub.s32 %s13, %s20
      %p22 = scmp.eq.s32.totalorder %s21, 0
      %s24 = sadd.s32 %s23, 1
      %s25 = scalar_select %p22, %s23, %s24
      %p28 = pneg %p22
      %p29 = scmp.eq.s32.totalorder %s13, 2
      %p30 = por %p28, %p29
      %p31 = scmp.ne.s32.totalorder %s23, %s26
      %p32 = scmp.eq.s32.totalorder %s13, 0
      %p33 = por %p31, %p32
      %p34 = scmp.ne.s32.totalorder %s23, %s26
      %p35 = scmp.eq.s32.totalorder %s18, 2
      %p36 = por %p34, %p35
      %p37 = scmp.ne.s32.totalorder %s26, %s27
      %p38 = scmp.eq.s32.totalorder %s18, 0
      %p39 = por %p37, %p38
      %p40 = scmp.ne.s32.totalorder %s26, %s27
      %p41 = scmp.eq.s32.totalorder %s19, 2
      %p42 = por %p40, %p41
      %p44 = scmp.ne.s32.totalorder %s27, %s43
      %p45 = scmp.eq.s32.totalorder %s19, 0
      %p46 = por %p44, %p45
      %s47 = ssub.s32 %s13, %s20
      %p48 = scmp.eq.s32.totalorder %s47, 0
      %s50 = sadd.s32 %s49, 1
      %s51 = scalar_select %p48, %s49, %s50
      %p54 = pneg %p48
      %p55 = scmp.eq.s32.totalorder %s13, 2
      %p56 = por %p54, %p55
      %p57 = scmp.ne.s32.totalorder %s49, %s52
      %p58 = scmp.eq.s32.totalorder %s13, 0
      %p59 = por %p57, %p58
      %p60 = scmp.ne.s32.totalorder %s49, %s52
      %p61 = scmp.eq.s32.totalorder %s18, 2
      %p62 = por %p60, %p61
      %p63 = scmp.ne.s32.totalorder %s52, %s53
      %p64 = scmp.eq.s32.totalorder %s18, 0
      %p65 = por %p63, %p64
      %p66 = scmp.ne.s32.totalorder %s52, %s53
      %p67 = scmp.eq.s32.totalorder %s19, 2
      %p68 = por %p66, %p67
      %p70 = scmp.ne.s32.totalorder %s53, %s69
      %p71 = scmp.eq.s32.totalorder %s19, 0
      %p72 = por %p70, %p71
      %p73 = scmp.le.s32.totalorder 1, %s13
      %p74 = scmp.lt.s32.totalorder %s13, 4
      %p75 = pnand %p73, %p74
      %p76 = pneg %p75
      // Predicated region
      $region9: #{tpu_custom_call.1} parent=5 // pred_check
        _
      $region10: #{tpu_custom_call.1} parent=5 // pred_check_branch
        %78 = sbr.rel (%p75) target = $region12
      $region11: #{tpu_custom_call.1} parent=5 // pred_region
        %s79 = ssub.s32 %s13, 1
      $region12: #{tpu_custom_call.1} parent=5 // pred_fallthru
        _
      %p80 = scmp.lt.s32.totalorder %s13, 3
      // Predicated region
      $region13: #{tpu_custom_call.1} parent=5 // pred_check
        %p81 = pneg %p80
      $region14: #{tpu_custom_call.1} parent=5 // pred_check_branch
        %83 = sbr.rel (%p81) target = $region16
      $region15: #{tpu_custom_call.1} parent=5 // pred_region
        // Predicated region
        $region17: #{tpu_custom_call.1} parent=15 // pred_check
          %p84 = pneg %p33
        $region18: #{tpu_custom_call.1} parent=15 // pred_check_branch
          %86 = sbr.rel (%p84) target = $region20
        $region19: #{tpu_custom_call.1} parent=15 // pred_region
          %s87 = sand.u32 %s23, 1
          %s88 = scalar_lea.sflag [#allocation3], %s87
          %s89 = sand.u32 %s23, 1
          %s90 = smul.addr %s89, 16
          %s91 = scalar_lea.vmem [#allocation2], %s90
          %93 = vsyncadd %s88, 0
          %s94 = smul.addr %s13, 2
          %s95 = smul.addr %s94, 8
          %s96 = scalar_lea.hbm %s0, %s95
          %s98 = sshll.u32 %s96, 4
          %s99 = int_to_ptr.hbm [resolvable:$true] %s98
          %s100 = sshll.u32 %s91, 4
          %s101 = int_to_ptr.vmem [resolvable:$true] %s100
          %103 = dma.hbm_to_vmem [thread:$0]  %s99, 256, %s101, %s88
        $region20: #{tpu_custom_call.1} parent=15 // pred_fallthru
          _
      $region16: #{tpu_custom_call.1} parent=5 // pred_fallthru
        _
      %p104 = scmp.le.s32.totalorder 1, %s13
      %p105 = scmp.lt.s32.totalorder %s13, 4
      %p106 = pnand %p104, %p105
      %p107 = pneg %p106
      // Predicated region
      $region21: #{tpu_custom_call.1} parent=5 // pred_check
        _
      $region22: #{tpu_custom_call.1} parent=5 // pred_check_branch
        %109 = sbr.rel (%p106) target = $region24
      $region23: #{tpu_custom_call.1} parent=5 // pred_region
        %s110 = ssub.s32 %s13, 1
        %s111 = sand.u32 %s26, 1
        %s112 = scalar_lea.sflag [#allocation3], %s111
        %s113 = sand.u32 %s26, 1
        %s114 = smul.addr %s113, 16
        %s115 = scalar_lea.vmem [#allocation2], %s114
        // Predicated region
        $region25: #{tpu_custom_call.1} parent=23 // pred_check
          %p116 = pneg %p39
        $region26: #{tpu_custom_call.1} parent=23 // pred_check_branch
          %118 = sbr.rel (%p116) target = $region28
        $region27: #{tpu_custom_call.1} parent=23 // pred_region
          %120 = dma.done %s112, 256
        $region28: #{tpu_custom_call.1} parent=23 // pred_fallthru
          _
        %s121 = sand.u32 %s26, 1
        %s122 = scalar_lea.sflag [#allocation3], %s121
        %s123 = sand.u32 %s26, 1
        %s124 = smul.addr %s123, 16
        %s125 = scalar_lea.vmem [#allocation2], %s124
        %p126 = pneg %p39
        %p127 = pneg %p36
        %p128 = pneg %p65
        %p129 = pneg %p62
        %s130 = sand.u32 %s52, 1
        %s131 = scalar_lea.sflag [#allocation4], %s130
        %s132 = sand.u32 %s52, 1
        %s133 = smul.addr %s132, 32
        %s134 = scalar_lea.vmem [#allocation5], %s133
        %135 = vst [vmem:[%s134] sm:$0xff] 0.5
        %136 = vst [vmem:[%s134 + $0x8] sm:$0xff] 0.5
        %137 = vst [vmem:[%s134 + $0x10] sm:$0xff] 0.5
        %vm138 = vcmask 130048
        %139 = vst.msk [vmem:[%s134 + $0x18] sm:$0xff] %vm138, 0.5
        %v140 = vld [vmem:[%s115] sm:$0xff]
        %142 = vrot.lane.b32.xlu0 %v140, 42
        %v143 = vpop.permute.xlu0 %142
        %vm145 = vcmask 474448
        %146 = vst.msk [vmem:[%s134] sm:$0xff] %vm145, %v143
        %v147 = vld [vmem:[%s115] sm:$0xff]
        %149 = vrot.lane.b32.xlu0 %v147, 46
        %v150 = vpop.permute.xlu0 %149
        %vm152 = vcmask 638448
        %153 = vst.msk [vmem:[%s134] sm:$0xff] %vm152, %v150
        %v154 = vld [vmem:[%s115] sm:$0xff]
        %156 = vrot.lane.b32.xlu0 %v154, 50
        %v157 = vpop.permute.xlu0 %156
        %vm159 = vcmask 802448
        %160 = vst.msk [vmem:[%s134] sm:$0xff] %vm159, %v157
        %v161 = vld [vmem:[%s115] sm:$0xff]
        %163 = vrot.lane.b32.xlu0 %v161, 54
        %v164 = vpop.permute.xlu0 %163
        %vm166 = vcmask 966448
        %167 = vst.msk [vmem:[%s134] sm:$0xff] %vm166, %v164
        %v168 = vld [vmem:[%s115] sm:$0xff]
        %170 = vrot.lane.b32.xlu0 %v168, 58
        %v171 = vpop.permute.xlu0 %170
        %vm173 = vcmask 1048528
        %174 = vst.msk [vmem:[%s134] sm:$0xff] %vm173, %v171
        %vm175 = vcmask 80896
        %176 = vst.msk [vmem:[%s134 + $0x8] sm:$0xff] %vm175, %v171
        %v177 = vld [vmem:[%s115] sm:$0xff]
        %179 = vrot.lane.b32.xlu0 %v177, 62
        %v180 = vpop.permute.xlu0 %179
        %vm182 = vcmask 244848
        %183 = vst.msk [vmem:[%s134 + $0x8] sm:$0xff] %vm182, %v180
        %v184 = vld [vmem:[%s115] sm:$0xff]
        %186 = vrot.lane.b32.xlu0 %v184, 66
        %v187 = vpop.permute.xlu0 %186
        %vm189 = vcmask 408848
        %190 = vst.msk [vmem:[%s134 + $0x8] sm:$0xff] %vm189, %v187
        %v191 = vld [vmem:[%s115] sm:$0xff]
        %193 = vrot.lane.b32.xlu0 %v191, 70
        %v194 = vpop.permute.xlu0 %193
        %vm196 = vcmask 572848
        %197 = vst.msk [vmem:[%s134 + $0x8] sm:$0xff] %vm196, %v194
        %v198 = vld [vmem:[%s115 + $0x8] sm:$0xff]
        %200 = vrot.lane.b32.xlu0 %v198, 74
        %v201 = vpop.permute.xlu0 %200
        %vm203 = vcmask 736848
        %204 = vst.msk [vmem:[%s134 + $0x8] sm:$0xff] %vm203, %v201
        %v205 = vld [vmem:[%s115 + $0x8] sm:$0xff]
        %207 = vrot.lane.b32.xlu0 %v205, 78
        %v208 = vpop.permute.xlu0 %207
        %vm210 = vcmask 900848
        %211 = vst.msk [vmem:[%s134 + $0x8] sm:$0xff] %vm210, %v208
        %v212 = vld [vmem:[%s115 + $0x8] sm:$0xff]
        %214 = vrot.lane.b32.xlu0 %v212, 82
        %v215 = vpop.permute.xlu0 %214
        %vm217 = vcmask 1048464
        %218 = vst.msk [vmem:[%s134 + $0x8] sm:$0xff] %vm217, %v215
        %vm219 = vcmask 15360
        %220 = vst.msk [vmem:[%s134 + $0x10] sm:$0xff] %vm219, %v215
        %v221 = vld [vmem:[%s115 + $0x8] sm:$0xff]
        %223 = vrot.lane.b32.xlu0 %v221, 86
        %v224 = vpop.permute.xlu0 %223
        %vm226 = vcmask 179248
        %227 = vst.msk [vmem:[%s134 + $0x10] sm:$0xff] %vm226, %v224
        %v228 = vld [vmem:[%s115 + $0x8] sm:$0xff]
        %230 = vrot.lane.b32.xlu0 %v228, 90
        %v231 = vpop.permute.xlu0 %230
        %vm233 = vcmask 343248
        %234 = vst.msk [vmem:[%s134 + $0x10] sm:$0xff] %vm233, %v231
        %v235 = vld [vmem:[%s115 + $0x8] sm:$0xff]
        %237 = vrot.lane.b32.xlu0 %v235, 94
        %v238 = vpop.permute.xlu0 %237
        %vm240 = vcmask 507248
        %241 = vst.msk [vmem:[%s134 + $0x10] sm:$0xff] %vm240, %v238
        %v242 = vld [vmem:[%s115 + $0x8] sm:$0xff]
        %244 = vrot.lane.b32.xlu0 %v242, 98
        %v245 = vpop.permute.xlu0 %244
        %vm247 = vcmask 671248
        %248 = vst.msk [vmem:[%s134 + $0x10] sm:$0xff] %vm247, %v245
        %v249 = vld [vmem:[%s115 + $0x8] sm:$0xff]
        %251 = vrot.lane.b32.xlu0 %v249, 102
        %v252 = vpop.permute.xlu0 %251
        %vm254 = vcmask 835248
        %255 = vst.msk [vmem:[%s134 + $0x10] sm:$0xff] %vm254, %v252
        %s256 = sand.u32 %s52, 1
        %s257 = scalar_lea.sflag [#allocation4], %s256
        %s258 = sand.u32 %s52, 1
        %s259 = smul.addr %s258, 32
        %s260 = scalar_lea.vmem [#allocation5], %s259
        // Predicated region
        $region29: #{tpu_custom_call.1} parent=23 // pred_check
          %p261 = pneg %p62
        $region30: #{tpu_custom_call.1} parent=23 // pred_check_branch
          %263 = sbr.rel (%p261) target = $region32
        $region31: #{tpu_custom_call.1} parent=23 // pred_region
          %265 = vsyncadd %s257, 0
          %s266 = smul.addr %s18, 4
          %s267 = smul.addr %s266, 8
          %s268 = scalar_lea.hbm %s1, %s267
          %s270 = sshll.u32 %s260, 4
          %s271 = int_to_ptr.vmem [resolvable:$true] %s270
          %s272 = sshll.u32 %s268, 4
          %s273 = int_to_ptr.hbm [resolvable:$true] %s272
          %275 = dma.vmem_to_hbm [thread:$0]  %s271, 512, %s273, %s257
        $region32: #{tpu_custom_call.1} parent=23 // pred_fallthru
          _
      $region24: #{tpu_custom_call.1} parent=5 // pred_fallthru
        _
      %p276 = scmp.le.s32.totalorder 2, %s13
      // Predicated region
      $region33: #{tpu_custom_call.1} parent=5 // pred_check
        %p277 = pneg %p276
      $region34: #{tpu_custom_call.1} parent=5 // pred_check_branch
        %279 = sbr.rel (%p277) target = $region36
      $region35: #{tpu_custom_call.1} parent=5 // pred_region
        %s280 = ssub.s32 %s13, 2
        // Predicated region
        $region37: #{tpu_custom_call.1} parent=35 // pred_check
          %p281 = pneg %p68
        $region38: #{tpu_custom_call.1} parent=35 // pred_check_branch
          %283 = sbr.rel (%p281) target = $region40
        $region39: #{tpu_custom_call.1} parent=35 // pred_region
          %s284 = sand.u32 %s53, 1
          %s285 = scalar_lea.sflag [#allocation4], %s284
          %s286 = sand.u32 %s53, 1
          %s287 = smul.addr %s286, 32
          %s288 = scalar_lea.vmem [#allocation5], %s287
          %290 = dma.done %s285, 512
        $region40: #{tpu_custom_call.1} parent=35 // pred_fallthru
          _
      $region36: #{tpu_custom_call.1} parent=5 // pred_fallthru
        _
    $region6: #{tpu_custom_call.1} parent=1 // loop_footer
      %s17 = sadd.s32 1, %s13
    $region7: #{tpu_custom_call.1} parent=1 // loop_footer_branch
      %12 = sbr.rel target = $region3
    $region8: #{tpu_custom_call.1} parent=1 // loop_exit
      _
    %291 = vsyncpa [#allocation3], 1
    %s292 = scalar_lea.sflag [#allocation3], 1
    %293 = vsyncpa %s292, 1
    %294 = vsyncpa [#allocation4], 1
    %s295 = scalar_lea.sflag [#allocation4], 1
    %296 = vsyncpa %s295, 1

</llo_original>
